<compile_context>
chip_gen: v6e
topology: v6e:2x2x1
jax: 0.10.0
libtpu: 0.0.40
codegen_flags: <defaults>
</compile_context>

<pallas_src>
import functools
import math

import jax
import jax.numpy as jnp
from jax.experimental import pallas as pl
from jax.experimental.pallas import tpu as pltpu


def _choose_q_tile(S):
    """Largest convenient query tile that divides S (multiple of 8 or S itself)."""
    if S <= 256:
        return S
    for t in (256, 128, 64, 32, 16, 8):
        if S % t == 0:
            return t
    return S


def self_attention_kernel(x_ref, wq_ref, bq_ref, wkv_ref, bkv_ref,
                          wfc_ref, bfc_ref, o_ref, k_scr, v_scr,
                          *, heads, tq):
    qi = pl.program_id(1)
    S = x_ref.shape[1]
    E = x_ref.shape[2]
    D = E // heads

    # ---- K/V projection: once per batch element, kept in VMEM scratch ----
    @pl.when(qi == 0)
    def _():
        x_full = x_ref[0]                                       # (S, E) bf16
        kv = jnp.dot(x_full, wkv_ref[...],
                     preferred_element_type=jnp.float32)        # (S, 2E) f32
        kv = (kv + bkv_ref[...]).astype(k_scr.dtype)            # bf16
        k_scr[...] = jnp.stack(
            [kv[:, h * D:(h + 1) * D] for h in range(heads)], axis=0)       # (H,S,D)
        v_scr[...] = jnp.stack(
            [kv[:, E + h * D:E + (h + 1) * D] for h in range(heads)], axis=0)

    # ---- Q projection for this query tile (scale already folded into wq) ----
    q_start = pl.multiple_of(qi * tq, tq)
    xq = x_ref[0, pl.ds(q_start, tq), :]                        # (tq, E) bf16
    q2 = jnp.dot(xq, wq_ref[...], preferred_element_type=jnp.float32)
    q2 = (q2 + bq_ref[...]).astype(jnp.bfloat16)                # (tq, E)
    q3 = jnp.stack([q2[:, h * D:(h + 1) * D] for h in range(heads)], axis=0)  # (H,tq,D)

    # ---- Heads-batched attention ----
    s = jnp.einsum('hqd,hkd->hqk', q3, k_scr[...],
                   preferred_element_type=jnp.float32)          # (H, tq, S)
    m = jnp.max(s, axis=-1, keepdims=True)
    p = jnp.exp(s - m)                                          # unnormalized probs
    l = jnp.sum(p, axis=-1, keepdims=True)                      # (H, tq, 1)
    o3 = jnp.einsum('hqk,hkd->hqd', p.astype(jnp.bfloat16), v_scr[...],
                    preferred_element_type=jnp.float32)         # (H, tq, D)
    o3 = o3 * pl.reciprocal(l, approx=True)                     # deferred softmax norm

    attn = jnp.concatenate([o3[h] for h in range(heads)], axis=-1)  # (tq, E)

    # ---- Output projection ----
    out = jnp.dot(attn.astype(jnp.bfloat16), wfc_ref[...],
                  preferred_element_type=jnp.float32)
    out = out + bfc_ref[...]
    o_ref[0] = out.astype(o_ref.dtype)


def self_attention(x, wqkv, bqkv, wfc, bfc, *, heads):
    """x: (B, S, E); wqkv: (E, 3E) (y = x @ W + b layout); bqkv: (3E,);
    wfc: (E, E); bfc: (E,)."""
    B, S, E = x.shape
    assert E % heads == 0
    D = E // heads
    scale = D ** (-0.5)

    # --- wrapper-side weight preprocessing (one-time XLA ops, outside kernel) ---
    # Permute fused qkv columns: interleaved (H, 3, D) -> contiguous (3, H, D)
    # so the projection output is [q_heads | k_heads | v_heads].
    w = wqkv.reshape(E, heads, 3, D).transpose(0, 2, 1, 3).reshape(E, 3 * E)
    b = bqkv.reshape(heads, 3, D).transpose(1, 0, 2).reshape(3 * E)

    wq = (w[:, :E] * scale).astype(jnp.bfloat16)            # scale folded into q
    bq = (b[:E] * scale).reshape(1, E).astype(jnp.float32)
    wkv = w[:, E:].astype(jnp.bfloat16)
    bkv = b[E:].reshape(1, 2 * E).astype(jnp.float32)
    wfc_b = wfc.astype(jnp.bfloat16)
    bfc2 = bfc.reshape(1, E).astype(jnp.float32)
    xb = x.astype(jnp.bfloat16)

    tq = _choose_q_tile(S)
    nq = S // tq

    kernel = functools.partial(self_attention_kernel, heads=heads, tq=tq)

    # Rough VMEM footprint (bf16 x & weights double-buffered, f32 transients).
    est = (2 * S * E * 2                      # x block (double-buffered)
           + 2 * 4 * E * E * 2                # weights
           + 2 * tq * E * 4                   # out block
           + 2 * S * E * 2                    # k/v scratch
           + S * 2 * E * 4                    # kv projection transient
           + 2 * heads * tq * S * 4           # scores / probs
           + 4 * tq * E * 4)                  # misc
    vmem_limit = int(min(max(2 * est, 32 * 1024 * 1024), 64 * 1024 * 1024))

    flops = (2 * B * S * E * 3 * E            # qkv projection
             + 2 * 2 * B * heads * S * S * D  # scores + PV
             + 2 * B * S * E * E)             # output projection
    bytes_accessed = (xb.size * 2 + wq.size * 2 + wkv.size * 2 + wfc_b.size * 2
                      + bq.size * 4 + bkv.size * 4 + bfc2.size * 4
                      + B * S * E * 4)

    return pl.pallas_call(
        kernel,
        out_shape=jax.ShapeDtypeStruct((B, S, E), x.dtype),
        grid_spec=pltpu.PrefetchScalarGridSpec(
            num_scalar_prefetch=0,
            grid=(B, nq),
            in_specs=[
                pl.BlockSpec((1, S, E), lambda bi, qi: (bi, 0, 0)),     # x (full S)
                pl.BlockSpec((E, E), lambda bi, qi: (0, 0)),            # wq
                pl.BlockSpec((1, E), lambda bi, qi: (0, 0)),            # bq
                pl.BlockSpec((E, 2 * E), lambda bi, qi: (0, 0)),        # wkv
                pl.BlockSpec((1, 2 * E), lambda bi, qi: (0, 0)),        # bkv
                pl.BlockSpec((E, E), lambda bi, qi: (0, 0)),            # wfc
                pl.BlockSpec((1, E), lambda bi, qi: (0, 0)),            # bfc
            ],
            out_specs=pl.BlockSpec((1, tq, E), lambda bi, qi: (bi, qi, 0)),
            scratch_shapes=[
                pltpu.VMEM((heads, S, D), jnp.bfloat16),   # K (H, S, D)
                pltpu.VMEM((heads, S, D), jnp.bfloat16),   # V (H, S, D)
            ],
        ),
        compiler_params=pltpu.CompilerParams(
            dimension_semantics=("parallel", "arbitrary"),
            vmem_limit_bytes=vmem_limit),
        cost_estimate=pl.CostEstimate(
            flops=int(flops),
            transcendentals=int(B * heads * S * S),
            bytes_accessed=int(bytes_accessed)),
    )(xb, wq, bq, wkv, bkv, wfc_b, bfc2)


def self_attention_reference(x, wqkv, bqkv, wfc, bfc, *, heads):
    """Pure-JAX f32 reference mirroring the PyTorch forward exactly."""
    B, S, E = x.shape
    D = E // heads
    scale = D ** (-0.5)
    qkv = x @ wqkv + bqkv                               # (B, S, 3E)
    qkv = qkv.reshape(B, S, heads, 3, D)
    q = jnp.transpose(qkv[..., 0, :], (0, 2, 1, 3))     # (B, H, S, D)
    k = jnp.transpose(qkv[..., 1, :], (0, 2, 1, 3))
    v = jnp.transpose(qkv[..., 2, :], (0, 2, 1, 3))
    s = jnp.einsum('bhqd,bhkd->bhqk', q, k) * scale
    p = jax.nn.softmax(s, axis=-1)
    o = jnp.einsum('bhqk,bhkd->bhqd', p, v)
    o = jnp.transpose(o, (0, 2, 1, 3)).reshape(B, S, E)
    return o @ wfc + bfc


if __name__ == "__main__":
    B, S, E, H = 2, 8, 32, 4

    key = jax.random.PRNGKey(0)
    kx, k1, k2, k3, k4 = jax.random.split(key, 5)

    x = jax.random.normal(kx, (B, S, E), dtype=jnp.float32)

    # Deterministic synthetic parameters (PyTorch Linear shapes, pre-transposed).
    bound = 1.0 / math.sqrt(E)
    wqkv = jax.random.uniform(k1, (E, 3 * E), jnp.float32, -bound, bound)
    bqkv = jax.random.uniform(k2, (3 * E,), jnp.float32, -bound, bound)
    wfc = jax.random.uniform(k3, (E, E), jnp.float32, -bound, bound)
    bfc = jax.random.uniform(k4, (E,), jnp.float32, -bound, bound)

    out = self_attention(x, wqkv, bqkv, wfc, bfc, heads=H)
    out = jax.block_until_ready(out)

    ref = self_attention_reference(x, wqkv, bqkv, wfc, bfc, heads=H)
    assert out.shape == (B, S, E)
    # bf16 MXU operands + approx reciprocal -> bf16-aware tolerance.
    assert jnp.allclose(out, ref, atol=3e-2, rtol=3e-2), "mismatch vs reference"

    print("KERNEL_OK")
</pallas_src>

<mosaic_0001>
module attributes {stable_mosaic.version = 11 : i64} {
  func.func @self_attention_kernel(%arg0: i32, %arg1: i32, %arg2: memref<1x8x32xbf16, #tpu.memory_space<vmem>>, %arg3: memref<32x32xbf16, #tpu.memory_space<vmem>>, %arg4: memref<1x32xf32, #tpu.memory_space<vmem>>, %arg5: memref<32x64xbf16, #tpu.memory_space<vmem>>, %arg6: memref<1x64xf32, #tpu.memory_space<vmem>>, %arg7: memref<32x32xbf16, #tpu.memory_space<vmem>>, %arg8: memref<1x32xf32, #tpu.memory_space<vmem>>, %arg9: memref<1x8x32xf32, #tpu.memory_space<vmem>>, %arg10: memref<4x8x8xbf16, #tpu.memory_space<vmem>>, %arg11: memref<4x8x8xbf16, #tpu.memory_space<vmem>>) attributes {dimension_semantics = [#tpu.dimension_semantics<parallel>, #tpu.dimension_semantics<arbitrary>], iteration_bounds = array<i64: 2, 1>, scalar_prefetch = 0 : i64, scratch_operands = 2 : i64, tpu.core_type = #tpu.core_type<tc>, window_params = [{transform_indices = @transform_0, window_bounds = array<i64: 1, 8, 32>}, {pipeline_mode = #tpu.pipeline_mode<synchronous>, transform_indices = @transform_1, window_bounds = array<i64: 32, 32>}, {pipeline_mode = #tpu.pipeline_mode<synchronous>, transform_indices = @transform_2, window_bounds = array<i64: 1, 32>}, {pipeline_mode = #tpu.pipeline_mode<synchronous>, transform_indices = @transform_3, window_bounds = array<i64: 32, 64>}, {pipeline_mode = #tpu.pipeline_mode<synchronous>, transform_indices = @transform_4, window_bounds = array<i64: 1, 64>}, {pipeline_mode = #tpu.pipeline_mode<synchronous>, transform_indices = @transform_5, window_bounds = array<i64: 32, 32>}, {pipeline_mode = #tpu.pipeline_mode<synchronous>, transform_indices = @transform_6, window_bounds = array<i64: 1, 32>}, {transform_indices = @transform_7, window_bounds = array<i64: 1, 8, 32>}]} {
    %c0_i32 = arith.constant 0 : i32
    %0 = arith.cmpi eq, %arg1, %c0_i32 : i32
    %1 = arith.extui %0 : i1 to i32
    %c0_i32_0 = arith.constant 0 : i32
    %2 = arith.cmpi ne, %1, %c0_i32_0 : i32
    scf.if %2 {
      %c0_24 = arith.constant 0 : index
      %c0_25 = arith.constant 0 : index
      %c0_26 = arith.constant 0 : index
      %56 = vector.load %arg2[%c0_24, %c0_25, %c0_26] : memref<1x8x32xbf16, #tpu.memory_space<vmem>>, vector<1x8x32xbf16>
      %57 = vector.shape_cast %56 : vector<1x8x32xbf16> to vector<8x32xbf16>
      %c0_27 = arith.constant 0 : index
      %c0_28 = arith.constant 0 : index
      %58 = vector.load %arg5[%c0_27, %c0_28] : memref<32x64xbf16, #tpu.memory_space<vmem>>, vector<32x64xbf16>
      %cst_29 = arith.constant dense<0.000000e+00> : vector<8x64xf32>
      %59 = tpu.matmul %57, %58, %cst_29 {dimension_numbers = #tpu.dot_dimension_numbers<[1], [0], [0], [1], [0, 0, 1, 1], [], []>} : vector<8x32xbf16>, vector<32x64xbf16>, vector<8x64xf32> -> vector<8x64xf32>
      %c0_30 = arith.constant 0 : index
      %c0_31 = arith.constant 0 : index
      %60 = vector.load %arg6[%c0_30, %c0_31] : memref<1x64xf32, #tpu.memory_space<vmem>>, vector<1x64xf32>
      %61 = vector.broadcast %60 : vector<1x64xf32> to vector<8x64xf32>
      %62 = arith.addf %59, %61 : vector<8x64xf32>
      %63 = arith.truncf %62 : vector<8x64xf32> to vector<8x64xbf16>
      %64 = vector.extract_strided_slice %63 {offsets = [0, 0], sizes = [8, 8], strides = [1, 1]} : vector<8x64xbf16> to vector<8x8xbf16>
      %65 = vector.extract_strided_slice %63 {offsets = [0, 8], sizes = [8, 8], strides = [1, 1]} : vector<8x64xbf16> to vector<8x8xbf16>
      %66 = vector.extract_strided_slice %63 {offsets = [0, 16], sizes = [8, 8], strides = [1, 1]} : vector<8x64xbf16> to vector<8x8xbf16>
      %67 = vector.extract_strided_slice %63 {offsets = [0, 24], sizes = [8, 8], strides = [1, 1]} : vector<8x64xbf16> to vector<8x8xbf16>
      %68 = vector.shape_cast %64 : vector<8x8xbf16> to vector<1x8x8xbf16>
      %69 = vector.shape_cast %65 : vector<8x8xbf16> to vector<1x8x8xbf16>
      %70 = vector.shape_cast %66 : vector<8x8xbf16> to vector<1x8x8xbf16>
      %71 = vector.shape_cast %67 : vector<8x8xbf16> to vector<1x8x8xbf16>
      %72 = tpu.concatenate %68, %69, %70, %71 in 0 : vector<1x8x8xbf16>, vector<1x8x8xbf16>, vector<1x8x8xbf16>, vector<1x8x8xbf16> -> vector<4x8x8xbf16>
      %c0_32 = arith.constant 0 : index
      %c0_33 = arith.constant 0 : index
      %c0_34 = arith.constant 0 : index
      %73 = vector.load %arg10[%c0_32, %c0_33, %c0_34] : memref<4x8x8xbf16, #tpu.memory_space<vmem>>, vector<4x8x8xbf16>
      tpu.vector_store %arg10[%c0_32, %c0_33, %c0_34], %72 {strides = array<i32>} : memref<4x8x8xbf16, #tpu.memory_space<vmem>>, vector<4x8x8xbf16>,
      %74 = vector.extract_strided_slice %63 {offsets = [0, 32], sizes = [8, 8], strides = [1, 1]} : vector<8x64xbf16> to vector<8x8xbf16>
      %75 = vector.extract_strided_slice %63 {offsets = [0, 40], sizes = [8, 8], strides = [1, 1]} : vector<8x64xbf16> to vector<8x8xbf16>
      %76 = vector.extract_strided_slice %63 {offsets = [0, 48], sizes = [8, 8], strides = [1, 1]} : vector<8x64xbf16> to vector<8x8xbf16>
      %77 = vector.extract_strided_slice %63 {offsets = [0, 56], sizes = [8, 8], strides = [1, 1]} : vector<8x64xbf16> to vector<8x8xbf16>
      %78 = vector.shape_cast %74 : vector<8x8xbf16> to vector<1x8x8xbf16>
      %79 = vector.shape_cast %75 : vector<8x8xbf16> to vector<1x8x8xbf16>
      %80 = vector.shape_cast %76 : vector<8x8xbf16> to vector<1x8x8xbf16>
      %81 = vector.shape_cast %77 : vector<8x8xbf16> to vector<1x8x8xbf16>
      %82 = tpu.concatenate %78, %79, %80, %81 in 0 : vector<1x8x8xbf16>, vector<1x8x8xbf16>, vector<1x8x8xbf16>, vector<1x8x8xbf16> -> vector<4x8x8xbf16>
      %c0_35 = arith.constant 0 : index
      %c0_36 = arith.constant 0 : index
      %c0_37 = arith.constant 0 : index
      %83 = vector.load %arg11[%c0_35, %c0_36, %c0_37] : memref<4x8x8xbf16, #tpu.memory_space<vmem>>, vector<4x8x8xbf16>
      tpu.vector_store %arg11[%c0_35, %c0_36, %c0_37], %82 {strides = array<i32>} : memref<4x8x8xbf16, #tpu.memory_space<vmem>>, vector<4x8x8xbf16>,
    } else {
    }
    %c8_i32 = arith.constant 8 : i32
    %3 = arith.muli %arg1, %c8_i32 : i32
    %4 = tpu.assume_multiple %3, 8 : i32
    %c0 = arith.constant 0 : index
    %5 = arith.index_cast %4 : i32 to index
    %c0_1 = arith.constant 0 : index
    %6 = vector.load %arg2[%c0, %5, %c0_1] : memref<1x8x32xbf16, #tpu.memory_space<vmem>>, vector<1x8x32xbf16>
    %7 = vector.shape_cast %6 : vector<1x8x32xbf16> to vector<8x32xbf16>
    %c0_2 = arith.constant 0 : index
    %c0_3 = arith.constant 0 : index
    %8 = vector.load %arg3[%c0_2, %c0_3] : memref<32x32xbf16, #tpu.memory_space<vmem>>, vector<32x32xbf16>
    %cst = arith.constant dense<0.000000e+00> : vector<8x32xf32>
    %9 = tpu.matmul %7, %8, %cst {dimension_numbers = #tpu.dot_dimension_numbers<[1], [0], [0], [1], [0, 0, 1, 1], [], []>} : vector<8x32xbf16>, vector<32x32xbf16>, vector<8x32xf32> -> vector<8x32xf32>
    %c0_4 = arith.constant 0 : index
    %c0_5 = arith.constant 0 : index
    %10 = vector.load %arg4[%c0_4, %c0_5] : memref<1x32xf32, #tpu.memory_space<vmem>>, vector<1x32xf32>
    %11 = vector.broadcast %10 : vector<1x32xf32> to vector<8x32xf32>
    %12 = arith.addf %9, %11 : vector<8x32xf32>
    %13 = arith.truncf %12 : vector<8x32xf32> to vector<8x32xbf16>
    %14 = vector.extract_strided_slice %13 {offsets = [0, 0], sizes = [8, 8], strides = [1, 1]} : vector<8x32xbf16> to vector<8x8xbf16>
    %15 = vector.extract_strided_slice %13 {offsets = [0, 8], sizes = [8, 8], strides = [1, 1]} : vector<8x32xbf16> to vector<8x8xbf16>
    %16 = vector.extract_strided_slice %13 {offsets = [0, 16], sizes = [8, 8], strides = [1, 1]} : vector<8x32xbf16> to vector<8x8xbf16>
    %17 = vector.extract_strided_slice %13 {offsets = [0, 24], sizes = [8, 8], strides = [1, 1]} : vector<8x32xbf16> to vector<8x8xbf16>
    %18 = vector.shape_cast %14 : vector<8x8xbf16> to vector<1x8x8xbf16>
    %19 = vector.shape_cast %15 : vector<8x8xbf16> to vector<1x8x8xbf16>
    %20 = vector.shape_cast %16 : vector<8x8xbf16> to vector<1x8x8xbf16>
    %21 = vector.shape_cast %17 : vector<8x8xbf16> to vector<1x8x8xbf16>
    %22 = tpu.concatenate %18, %19, %20, %21 in 0 : vector<1x8x8xbf16>, vector<1x8x8xbf16>, vector<1x8x8xbf16>, vector<1x8x8xbf16> -> vector<4x8x8xbf16>
    %c0_6 = arith.constant 0 : index
    %c0_7 = arith.constant 0 : index
    %c0_8 = arith.constant 0 : index
    %23 = vector.load %arg10[%c0_6, %c0_7, %c0_8] : memref<4x8x8xbf16, #tpu.memory_space<vmem>>, vector<4x8x8xbf16>
    "tpu.trace_start"() <{level = 10 : i32, message = "hqd,hkd->hqk"}> : () -> ()
    %cst_9 = arith.constant dense<0.000000e+00> : vector<4x8x8xf32>
    %24 = tpu.matmul %22, %23, %cst_9 {dimension_numbers = #tpu.dot_dimension_numbers<[2], [2], [1], [1], [0, 0, 0, 1, 1, 1], [0], [0]>} : vector<4x8x8xbf16>, vector<4x8x8xbf16>, vector<4x8x8xf32> -> vector<4x8x8xf32>
    "tpu.trace_stop"() : () -> ()
    %cst_10 = arith.constant dense<0xFF800000> : vector<4x8xf32>
    %25 = vector.multi_reduction <maximumf>, %24, %cst_10 [2] : vector<4x8x8xf32> to vector<4x8xf32>
    %26 = vector.shape_cast %25 : vector<4x8xf32> to vector<4x8x1xf32>
    %27 = vector.broadcast %26 : vector<4x8x1xf32> to vector<4x8x8xf32>
    %28 = arith.subf %24, %27 : vector<4x8x8xf32>
    %29 = math.exp %28 : vector<4x8x8xf32>
    %cst_11 = arith.constant dense<0.000000e+00> : vector<4x8xf32>
    %30 = vector.multi_reduction <add>, %29, %cst_11 [2] : vector<4x8x8xf32> to vector<4x8xf32>
    %31 = vector.shape_cast %30 : vector<4x8xf32> to vector<4x8x1xf32>
    %32 = arith.truncf %29 : vector<4x8x8xf32> to vector<4x8x8xbf16>
    %c0_12 = arith.constant 0 : index
    %c0_13 = arith.constant 0 : index
    %c0_14 = arith.constant 0 : index
    %33 = vector.load %arg11[%c0_12, %c0_13, %c0_14] : memref<4x8x8xbf16, #tpu.memory_space<vmem>>, vector<4x8x8xbf16>
    "tpu.trace_start"() <{level = 10 : i32, message = "hqk,hkd->hqd"}> : () -> ()
    %cst_15 = arith.constant dense<0.000000e+00> : vector<4x8x8xf32>
    %34 = tpu.matmul %32, %33, %cst_15 {dimension_numbers = #tpu.dot_dimension_numbers<[2], [1], [1], [2], [0, 0, 0, 1, 1, 2], [0], [0]>} : vector<4x8x8xbf16>, vector<4x8x8xbf16>, vector<4x8x8xf32> -> vector<4x8x8xf32>
    "tpu.trace_stop"() : () -> ()
    %35 = tpu.reciprocal %31 {approx = true} : vector<4x8x1xf32> -> vector<4x8x1xf32>
    %36 = vector.broadcast %35 : vector<4x8x1xf32> to vector<4x8x8xf32>
    %37 = arith.mulf %34, %36 : vector<4x8x8xf32>
    %38 = vector.extract_strided_slice %37 {offsets = [0, 0, 0], sizes = [1, 8, 8], strides = [1, 1, 1]} : vector<4x8x8xf32> to vector<1x8x8xf32>
    %39 = vector.shape_cast %38 : vector<1x8x8xf32> to vector<8x8xf32>
    %40 = vector.extract_strided_slice %37 {offsets = [1, 0, 0], sizes = [1, 8, 8], strides = [1, 1, 1]} : vector<4x8x8xf32> to vector<1x8x8xf32>
    %41 = vector.shape_cast %40 : vector<1x8x8xf32> to vector<8x8xf32>
    %42 = vector.extract_strided_slice %37 {offsets = [2, 0, 0], sizes = [1, 8, 8], strides = [1, 1, 1]} : vector<4x8x8xf32> to vector<1x8x8xf32>
    %43 = vector.shape_cast %42 : vector<1x8x8xf32> to vector<8x8xf32>
    %44 = vector.extract_strided_slice %37 {offsets = [3, 0, 0], sizes = [1, 8, 8], strides = [1, 1, 1]} : vector<4x8x8xf32> to vector<1x8x8xf32>
    %45 = vector.shape_cast %44 : vector<1x8x8xf32> to vector<8x8xf32>
    %46 = tpu.concatenate %39, %41, %43, %45 in 1 : vector<8x8xf32>, vector<8x8xf32>, vector<8x8xf32>, vector<8x8xf32> -> vector<8x32xf32>
    %47 = arith.truncf %46 : vector<8x32xf32> to vector<8x32xbf16>
    %c0_16 = arith.constant 0 : index
    %c0_17 = arith.constant 0 : index
    %48 = vector.load %arg7[%c0_16, %c0_17] : memref<32x32xbf16, #tpu.memory_space<vmem>>, vector<32x32xbf16>
    %cst_18 = arith.constant dense<0.000000e+00> : vector<8x32xf32>
    %49 = tpu.matmul %47, %48, %cst_18 {dimension_numbers = #tpu.dot_dimension_numbers<[1], [0], [0], [1], [0, 0, 1, 1], [], []>} : vector<8x32xbf16>, vector<32x32xbf16>, vector<8x32xf32> -> vector<8x32xf32>
    %c0_19 = arith.constant 0 : index
    %c0_20 = arith.constant 0 : index
    %50 = vector.load %arg8[%c0_19, %c0_20] : memref<1x32xf32, #tpu.memory_space<vmem>>, vector<1x32xf32>
    %51 = vector.broadcast %50 : vector<1x32xf32> to vector<8x32xf32>
    %52 = arith.addf %49, %51 : vector<8x32xf32>
    %c0_21 = arith.constant 0 : index
    %c0_22 = arith.constant 0 : index
    %c0_23 = arith.constant 0 : index
    %53 = vector.load %arg9[%c0_21, %c0_22, %c0_23] : memref<1x8x32xf32, #tpu.memory_space<vmem>>, vector<1x8x32xf32>
    %54 = vector.shape_cast %53 : vector<1x8x32xf32> to vector<8x32xf32>
    %55 = vector.shape_cast %52 : vector<8x32xf32> to vector<1x8x32xf32>
    tpu.vector_store %arg9[%c0_21, %c0_22, %c0_23], %55 {strides = array<i32>} : memref<1x8x32xf32, #tpu.memory_space<vmem>>, vector<1x8x32xf32>,
    return
  }
  func.func @transform_0(%arg0: i32, %arg1: i32) -> (i32, i32, i32) {
    %c0_i32 = arith.constant 0 : i32
    %c0_i32_0 = arith.constant 0 : i32
    %c0_i32_1 = arith.constant 0 : i32
    return %arg0, %c0_i32, %c0_i32_0 : i32, i32, i32
  }
  func.func @transform_1(%arg0: i32, %arg1: i32) -> (i32, i32) {
    %c0_i32 = arith.constant 0 : i32
    %c0_i32_0 = arith.constant 0 : i32
    %c0_i32_1 = arith.constant 0 : i32
    return %c0_i32, %c0_i32_0 : i32, i32
  }
  func.func @transform_2(%arg0: i32, %arg1: i32) -> (i32, i32) {
    %c0_i32 = arith.constant 0 : i32
    %c0_i32_0 = arith.constant 0 : i32
    %c0_i32_1 = arith.constant 0 : i32
    return %c0_i32, %c0_i32_0 : i32, i32
  }
  func.func @transform_3(%arg0: i32, %arg1: i32) -> (i32, i32) {
    %c0_i32 = arith.constant 0 : i32
    %c0_i32_0 = arith.constant 0 : i32
    %c0_i32_1 = arith.constant 0 : i32
    return %c0_i32, %c0_i32_0 : i32, i32
  }
  func.func @transform_4(%arg0: i32, %arg1: i32) -> (i32, i32) {
    %c0_i32 = arith.constant 0 : i32
    %c0_i32_0 = arith.constant 0 : i32
    %c0_i32_1 = arith.constant 0 : i32
    return %c0_i32, %c0_i32_0 : i32, i32
  }
  func.func @transform_5(%arg0: i32, %arg1: i32) -> (i32, i32) {
    %c0_i32 = arith.constant 0 : i32
    %c0_i32_0 = arith.constant 0 : i32
    %c0_i32_1 = arith.constant 0 : i32
    return %c0_i32, %c0_i32_0 : i32, i32
  }
  func.func @transform_6(%arg0: i32, %arg1: i32) -> (i32, i32) {
    %c0_i32 = arith.constant 0 : i32
    %c0_i32_0 = arith.constant 0 : i32
    %c0_i32_1 = arith.constant 0 : i32
    return %c0_i32, %c0_i32_0 : i32, i32
  }
  func.func @transform_7(%arg0: i32, %arg1: i32) -> (i32, i32, i32) {
    %c0_i32 = arith.constant 0 : i32
    %c0_i32_0 = arith.constant 0 : i32
    return %arg0, %arg1, %c0_i32 : i32, i32, i32
  }
}

</mosaic_0001>

<llo_original>
// kernel: tpu_custom_call.1
$region0: #{tpu_custom_call.1}
  #allocation0 [shape = 'u32[]', space=smem, size = 0x4, offset = 0x4, fixed_abs, tag = 'smem constant byte address 0x4 - core index']
  #allocation1 [shape = 'u32[144,128]{1,0:T(1,128)}', space=vmem, size = 0x12000, scoped, tag = 'internal scratch']
  #allocation2 [shape = 'bf16[4,8,8]{2,1,0:T(8,128)(2,1)}', space=vmem, size = 0x2000, scoped, tag = 'scratch operand']
  #allocation3 [shape = 'bf16[4,8,8]{2,1,0:T(8,128)(2,1)}', space=vmem, size = 0x2000, scoped, tag = 'scratch operand']
  %s0 = inlined_call_operand.hbm [shape: bf16[2,8,32], index: 0, kind: input, shape index: {}]
  %s1 = inlined_call_operand.hbm [shape: bf16[32,32], index: 1, kind: input, shape index: {}]
  %s2 = inlined_call_operand.vmem [shape: f32[1,32], index: 2, kind: input, shape index: {}]
  %s3 = inlined_call_operand.hbm [shape: bf16[32,64], index: 3, kind: input, shape index: {}]
  %s4 = inlined_call_operand.vmem [shape: f32[1,64], index: 4, kind: input, shape index: {}]
  %s5 = inlined_call_operand.hbm [shape: bf16[32,32], index: 5, kind: input, shape index: {}]
  %s6 = inlined_call_operand.vmem [shape: f32[1,32], index: 6, kind: input, shape index: {}]
  %s7 = inlined_call_operand.hbm [shape: f32[2,8,32], index: 7, kind: output, shape index: {}]
  %s8 = sld [smem:[#allocation0]]
  $region81: #{tpu_custom_call.1} parent=0
    _
  %s10 = ssub.s32 1, %s8
  %s11 = scalar_select 0, %s10, %s8
  $region1: #{tpu_custom_call.1} parent=0
    #allocation4 [shape = 'u8[4096]{0}', space=vmem, size = 0x1000, scoped, tag = 'input window, operand 0']
    #allocation5 [shape = 's32[2]{0}', space=sflag, size = 0x8, scoped, tag = 'scoped memory for tpu_custom_call.1']
    #allocation6 [shape = 's32[2]{0}', space=sflag, size = 0x8, scoped, tag = 'scoped memory for tpu_custom_call.1']
    #allocation7 [shape = 'u8[8192]{0}', space=vmem, size = 0x2000, scoped, tag = 'input window, operand 1, single buffered']
    #allocation8 [shape = 's32[1]{0}', space=sflag, size = 0x4, scoped, tag = 'scoped memory for tpu_custom_call.1']
    #allocation9 [shape = 'u8[8192]{0}', space=vmem, size = 0x2000, scoped, tag = 'input window, operand 3, single buffered']
    #allocation10 [shape = 'u8[8192]{0}', space=vmem, size = 0x2000, scoped, tag = 'input window, operand 5, single buffered']
    #allocation11 [shape = 's32[1]{0}', space=sflag, size = 0x4, scoped, tag = 'scoped memory for tpu_custom_call.1']
    #allocation12 [shape = 'u8[8192]{0}', space=vmem, size = 0x2000, scoped, tag = 'output window, operand 0']
    %12 = vsyncpa [#allocation5], 0
    %s13 = scalar_lea.sflag [#allocation5], 1
    %14 = vsyncpa %s13, 0
    %15 = vsyncpa [#allocation8], 0
    %16 = vsyncpa [#allocation11], 0
    %17 = vsyncpa [#allocation6], 0
    %s18 = scalar_lea.sflag [#allocation6], 1
    %19 = vsyncpa %s18, 0
    loop: start=0, step=1, limit=4
    $region2: #{tpu_custom_call.1} parent=1 // loop_pre_header
      _
    $region3: #{tpu_custom_call.1} parent=1 // loop_header
      %s21 = sphi 0, %s25
      %p22 = scmp.ge.s32.totalorder %s21, 4
      %s28 = sphi 0, %s40
      %s29 = sphi 0, %s36
      %s30 = sphi 0, %s28
      %s31 = sphi 0, %s29
      %s32 = sphi 0, %s30
      %s33 = sphi 0, %s31
      %s43 = sphi 0, %s45
      %s46 = sphi 0, %s43
      %s47 = sphi 0, %s46
      %s63 = sphi 0, %s47
      %s67 = sphi 0, %s67
      %s69 = sphi 0, %s67
      %s70 = sphi 0, %s69
      %s84 = sphi 0, %s70
      %s88 = sphi 0, %s88
      %s90 = sphi 0, %s88
      %s91 = sphi 0, %s90
      %s105 = sphi 0, %s91
      %s109 = sphi 0, %s109
      %s111 = sphi 0, %s109
      %s112 = sphi 0, %s111
      %s126 = sphi 0, %s112
      %s130 = sphi 0, %s130
      %s132 = sphi 0, %s130
      %s133 = sphi 0, %s132
      %s147 = sphi 0, %s133
      %s151 = sphi 0, %s151
      %s153 = sphi 0, %s151
      %s154 = sphi 0, %s153
      %s168 = sphi 0, %s154
      %s172 = sphi 0, %s172
      %s174 = sphi 0, %s172
      %s175 = sphi 0, %s174
      %s189 = sphi 0, %s175
      %s197 = sphi 0, %s199
      %s200 = sphi 0, %s197
      %s201 = sphi 0, %s200
      %s217 = sphi 0, %s201
    $region4: #{tpu_custom_call.1} parent=1 // loop_header_branch
      %24 = sbr.rel (%p22) target = $region8
    $region5: #{tpu_custom_call.1} parent=1 // loop_body
      %s26 = ssub.s32 %s21, 1
      %s27 = ssub.s32 %s21, 2
      %s34 = sadd.s32 1, %s29
      %p35 = scmp.ge.s32.totalorder %s34, 1
      %s36 = scalar_select %p35, 0, %s34
      %s37 = sadd.s32 1, %s28
      %s38 = scalar_select %p35, %s37, %s28
      %p39 = scmp.ge.s32.totalorder %s38, 2
      %s40 = scalar_select %p39, 0, %s38
      %s41 = ssub.s32 %s28, %s40
      %p42 = scmp.eq.s32.totalorder %s41, 0
      %s44 = sadd.s32 %s43, 1
      %s45 = scalar_select %p42, %s43, %s44
      %p48 = pneg %p42
      %p49 = scmp.eq.s32.totalorder %s21, 1
      %p50 = por %p48, %p49
      %p51 = scmp.ne.s32.totalorder %s43, %s46
      %p52 = scmp.eq.s32.totalorder %s21, 0
      %p53 = por %p51, %p52
      %p54 = scmp.ne.s32.totalorder %s43, %s46
      %p55 = scmp.eq.s32.totalorder %s26, 1
      %p56 = por %p54, %p55
      %p57 = scmp.ne.s32.totalorder %s46, %s47
      %p58 = scmp.eq.s32.totalorder %s26, 0
      %p59 = por %p57, %p58
      %p60 = scmp.ne.s32.totalorder %s46, %s47
      %p61 = scmp.eq.s32.totalorder %s27, 1
      %p62 = por %p60, %p61
      %p64 = scmp.ne.s32.totalorder %s47, %s63
      %p65 = scmp.eq.s32.totalorder %s27, 0
      %p66 = por %p64, %p65
      %s68 = sadd.s32 %s67, 1
      %p71 = scmp.eq.s32.totalorder %s21, 1
      %p72 = scmp.ne.s32.totalorder %s67, %s69
      %p73 = scmp.eq.s32.totalorder %s21, 0
      %p74 = por %p72, %p73
      %p75 = scmp.ne.s32.totalorder %s67, %s69
      %p76 = scmp.eq.s32.totalorder %s26, 1
      %p77 = por %p75, %p76
      %p78 = scmp.ne.s32.totalorder %s69, %s70
      %p79 = scmp.eq.s32.totalorder %s26, 0
      %p80 = por %p78, %p79
      %p81 = scmp.ne.s32.totalorder %s69, %s70
      %p82 = scmp.eq.s32.totalorder %s27, 1
      %p83 = por %p81, %p82
      %p85 = scmp.ne.s32.totalorder %s70, %s84
      %p86 = scmp.eq.s32.totalorder %s27, 0
      %p87 = por %p85, %p86
      %s89 = sadd.s32 %s88, 1
      %p92 = scmp.eq.s32.totalorder %s21, 1
      %p93 = scmp.ne.s32.totalorder %s88, %s90
      %p94 = scmp.eq.s32.totalorder %s21, 0
      %p95 = por %p93, %p94
      %p96 = scmp.ne.s32.totalorder %s88, %s90
      %p97 = scmp.eq.s32.totalorder %s26, 1
      %p98 = por %p96, %p97
      %p99 = scmp.ne.s32.totalorder %s90, %s91
      %p100 = scmp.eq.s32.totalorder %s26, 0
      %p101 = por %p99, %p100
      %p102 = scmp.ne.s32.totalorder %s90, %s91
      %p103 = scmp.eq.s32.totalorder %s27, 1
      %p104 = por %p102, %p103
      %p106 = scmp.ne.s32.totalorder %s91, %s105
      %p107 = scmp.eq.s32.totalorder %s27, 0
      %p108 = por %p106, %p107
      %s110 = sadd.s32 %s109, 1
      %p113 = scmp.eq.s32.totalorder %s21, 1
      %p114 = scmp.ne.s32.totalorder %s109, %s111
      %p115 = scmp.eq.s32.totalorder %s21, 0
      %p116 = por %p114, %p115
      %p117 = scmp.ne.s32.totalorder %s109, %s111
      %p118 = scmp.eq.s32.totalorder %s26, 1
      %p119 = por %p117, %p118
      %p120 = scmp.ne.s32.totalorder %s111, %s112
      %p121 = scmp.eq.s32.totalorder %s26, 0
      %p122 = por %p120, %p121
      %p123 = scmp.ne.s32.totalorder %s111, %s112
      %p124 = scmp.eq.s32.totalorder %s27, 1
      %p125 = por %p123, %p124
      %p127 = scmp.ne.s32.totalorder %s112, %s126
      %p128 = scmp.eq.s32.totalorder %s27, 0
      %p129 = por %p127, %p128
      %s131 = sadd.s32 %s130, 1
      %p134 = scmp.eq.s32.totalorder %s21, 1
      %p135 = scmp.ne.s32.totalorder %s130, %s132
      %p136 = scmp.eq.s32.totalorder %s21, 0
      %p137 = por %p135, %p136
      %p138 = scmp.ne.s32.totalorder %s130, %s132
      %p139 = scmp.eq.s32.totalorder %s26, 1
      %p140 = por %p138, %p139
      %p141 = scmp.ne.s32.totalorder %s132, %s133
      %p142 = scmp.eq.s32.totalorder %s26, 0
      %p143 = por %p141, %p142
      %p144 = scmp.ne.s32.totalorder %s132, %s133
      %p145 = scmp.eq.s32.totalorder %s27, 1
      %p146 = por %p144, %p145
      %p148 = scmp.ne.s32.totalorder %s133, %s147
      %p149 = scmp.eq.s32.totalorder %s27, 0
      %p150 = por %p148, %p149
      %s152 = sadd.s32 %s151, 1
      %p155 = scmp.eq.s32.totalorder %s21, 1
      %p156 = scmp.ne.s32.totalorder %s151, %s153
      %p157 = scmp.eq.s32.totalorder %s21, 0
      %p158 = por %p156, %p157
      %p159 = scmp.ne.s32.totalorder %s151, %s153
      %p160 = scmp.eq.s32.totalorder %s26, 1
      %p161 = por %p159, %p160
      %p162 = scmp.ne.s32.totalorder %s153, %s154
      %p163 = scmp.eq.s32.totalorder %s26, 0
      %p164 = por %p162, %p163
      %p165 = scmp.ne.s32.totalorder %s153, %s154
      %p166 = scmp.eq.s32.totalorder %s27, 1
      %p167 = por %p165, %p166
      %p169 = scmp.ne.s32.totalorder %s154, %s168
      %p170 = scmp.eq.s32.totalorder %s27, 0
      %p171 = por %p169, %p170
      %s173 = sadd.s32 %s172, 1
      %p176 = scmp.eq.s32.totalorder %s21, 1
      %p177 = scmp.ne.s32.totalorder %s172, %s174
      %p178 = scmp.eq.s32.totalorder %s21, 0
      %p179 = por %p177, %p178
      %p180 = scmp.ne.s32.totalorder %s172, %s174
      %p181 = scmp.eq.s32.totalorder %s26, 1
      %p182 = por %p180, %p181
      %p183 = scmp.ne.s32.totalorder %s174, %s175
      %p184 = scmp.eq.s32.totalorder %s26, 0
      %p185 = por %p183, %p184
      %p186 = scmp.ne.s32.totalorder %s174, %s175
      %p187 = scmp.eq.s32.totalorder %s27, 1
      %p188 = por %p186, %p187
      %p190 = scmp.ne.s32.totalorder %s175, %s189
      %p191 = scmp.eq.s32.totalorder %s27, 0
      %p192 = por %p190, %p191
      %s193 = ssub.s32 %s28, %s40
      %s194 = ssub.s32 %s29, %s36
      %s195 = sor.u32 %s193, %s194
      %p196 = scmp.eq.s32.totalorder %s195, 0
      %s198 = sadd.s32 %s197, 1
      %s199 = scalar_select %p196, %s197, %s198
      %p202 = pneg %p196
      %p203 = scmp.eq.s32.totalorder %s21, 1
      %p204 = por %p202, %p203
      %p205 = scmp.ne.s32.totalorder %s197, %s200
      %p206 = scmp.eq.s32.totalorder %s21, 0
      %p207 = por %p205, %p206
      %p208 = scmp.ne.s32.totalorder %s197, %s200
      %p209 = scmp.eq.s32.totalorder %s26, 1
      %p210 = por %p208, %p209
      %p211 = scmp.ne.s32.totalorder %s200, %s201
      %p212 = scmp.eq.s32.totalorder %s26, 0
      %p213 = por %p211, %p212
      %p214 = scmp.ne.s32.totalorder %s200, %s201
      %p215 = scmp.eq.s32.totalorder %s27, 1
      %p216 = por %p214, %p215
      %p218 = scmp.ne.s32.totalorder %s201, %s217
      %p219 = scmp.eq.s32.totalorder %s27, 0
      %p220 = por %p218, %p219
      %p221 = scmp.le.s32.totalorder 1, %s21
      %p222 = scmp.lt.s32.totalorder %s21, 3
      %p223 = pnand %p221, %p222
      %p224 = pneg %p223
      // Predicated region
      $region9: #{tpu_custom_call.1} parent=5 // pred_check
        _
      $region10: #{tpu_custom_call.1} parent=5 // pred_check_branch
        %226 = sbr.rel (%p223) target = $region12
      $region11: #{tpu_custom_call.1} parent=5 // pred_region
        %s227 = ssub.s32 %s21, 1
        // Predicated region
        $region13: #{tpu_custom_call.1} parent=11 // pred_check
          %p228 = pneg %p80
        $region14: #{tpu_custom_call.1} parent=11 // pred_check_branch
          %230 = sbr.rel (%p228) target = $region16
        $region15: #{tpu_custom_call.1} parent=11 // pred_region
          %s232 = ssub.s32 256, 256
          %233 = vsyncadd [#allocation8], %s232
          %s234 = sshll.u32 [#allocation7], 4
          %s235 = int_to_ptr.vmem [resolvable:$true] %s234
          %240 = dma.hbm_to_vmem [thread:$0]  %s1, 256, %s235, [#allocation8], 64, 64, 4
        $region16: #{tpu_custom_call.1} parent=11 // pred_fallthru
          _
        // Predicated region
        $region17: #{tpu_custom_call.1} parent=11 // pred_check
          %p241 = pneg %p101
        $region18: #{tpu_custom_call.1} parent=11 // pred_check_branch
          %243 = sbr.rel (%p241) target = $region20
        $region19: #{tpu_custom_call.1} parent=11 // pred_region
          _
        $region20: #{tpu_custom_call.1} parent=11 // pred_fallthru
          _
        // Predicated region
        $region21: #{tpu_custom_call.1} parent=11 // pred_check
          %p244 = pneg %p122
        $region22: #{tpu_custom_call.1} parent=11 // pred_check_branch
          %246 = sbr.rel (%p244) target = $region24
        $region23: #{tpu_custom_call.1} parent=11 // pred_region
          %s248 = ssub.s32 256, 256
          %249 = vsyncadd [#allocation8], %s248
          %s250 = sshll.u32 [#allocation9], 4
          %s251 = int_to_ptr.vmem [resolvable:$true] %s250
          %256 = dma.hbm_to_vmem [thread:$0]  %s3, 256, %s251, [#allocation8], 64, 64, 4
        $region24: #{tpu_custom_call.1} parent=11 // pred_fallthru
          _
        // Predicated region
        $region25: #{tpu_custom_call.1} parent=11 // pred_check
          %p257 = pneg %p143
        $region26: #{tpu_custom_call.1} parent=11 // pred_check_branch
          %259 = sbr.rel (%p257) target = $region28
        $region27: #{tpu_custom_call.1} parent=11 // pred_region
          _
        $region28: #{tpu_custom_call.1} parent=11 // pred_fallthru
          _
        // Predicated region
        $region29: #{tpu_custom_call.1} parent=11 // pred_check
          %p260 = pneg %p164
        $region30: #{tpu_custom_call.1} parent=11 // pred_check_branch
          %262 = sbr.rel (%p260) target = $region32
        $region31: #{tpu_custom_call.1} parent=11 // pred_region
          %s264 = ssub.s32 256, 256
          %265 = vsyncadd [#allocation11], %s264
          %s266 = sshll.u32 [#allocation10], 4
          %s267 = int_to_ptr.vmem [resolvable:$true] %s266
          %272 = dma.hbm_to_vmem [thread:$0]  %s5, 256, %s267, [#allocation11], 64, 64, 4
        $region32: #{tpu_custom_call.1} parent=11 // pred_fallthru
          _
        // Predicated region
        $region33: #{tpu_custom_call.1} parent=11 // pred_check
          %p273 = pneg %p185
        $region34: #{tpu_custom_call.1} parent=11 // pred_check_branch
          %275 = sbr.rel (%p273) target = $region36
        $region35: #{tpu_custom_call.1} parent=11 // pred_region
          _
        $region36: #{tpu_custom_call.1} parent=11 // pred_fallthru
          _
      $region12: #{tpu_custom_call.1} parent=5 // pred_fallthru
        _
      %p276 = scmp.lt.s32.totalorder %s21, 2
      // Predicated region
      $region37: #{tpu_custom_call.1} parent=5 // pred_check
        %p277 = pneg %p276
      $region38: #{tpu_custom_call.1} parent=5 // pred_check_branch
        %279 = sbr.rel (%p277) target = $region40
      $region39: #{tpu_custom_call.1} parent=5 // pred_region
        // Predicated region
        $region41: #{tpu_custom_call.1} parent=39 // pred_check
          %p280 = pneg %p53
        $region42: #{tpu_custom_call.1} parent=39 // pred_check_branch
          %282 = sbr.rel (%p280) target = $region44
        $region43: #{tpu_custom_call.1} parent=39 // pred_region
          %s283 = sand.u32 %s43, 1
          %s284 = scalar_lea.sflag [#allocation5], %s283
          %s285 = sand.u32 %s43, 1
          %s286 = smul.addr %s285, 4
          %s287 = scalar_lea.vmem [#allocation4], %s286
          %s289 = ssub.s32 64, 64
          %290 = vsyncadd %s284, %s289
          %s291 = smul.addr %s28, 64
          %s292 = scalar_lea.hbm %s0, %s291
          %s294 = sshll.u32 %s287, 4
          %s295 = int_to_ptr.vmem [resolvable:$true] %s294
          %297 = dma.hbm_to_vmem [thread:$0]  %s292, 64, %s295, %s284
        $region44: #{tpu_custom_call.1} parent=39 // pred_fallthru
          _
      $region40: #{tpu_custom_call.1} parent=5 // pred_fallthru
        _
      %p298 = scmp.le.s32.totalorder 1, %s21
      %p299 = scmp.lt.s32.totalorder %s21, 3
      %p300 = pnand %p298, %p299
      %p301 = pneg %p300
      // Predicated region
      $region45: #{tpu_custom_call.1} parent=5 // pred_check
        _
      $region46: #{tpu_custom_call.1} parent=5 // pred_check_branch
        %303 = sbr.rel (%p300) target = $region48
      $region47: #{tpu_custom_call.1} parent=5 // pred_region
        %s304 = ssub.s32 %s21, 1
        %s305 = sand.u32 %s46, 1
        %s306 = scalar_lea.sflag [#allocation5], %s305
        %s307 = sand.u32 %s46, 1
        %s308 = smul.addr %s307, 4
        %s309 = scalar_lea.vmem [#allocation4], %s308
        // Predicated region
        $region49: #{tpu_custom_call.1} parent=47 // pred_check
          %p310 = pneg %p59
        $region50: #{tpu_custom_call.1} parent=47 // pred_check_branch
          %312 = sbr.rel (%p310) target = $region52
        $region51: #{tpu_custom_call.1} parent=47 // pred_region
          %313 = dma.done %s306, 64
        $region52: #{tpu_custom_call.1} parent=47 // pred_fallthru
          _
        // Predicated region
        $region53: #{tpu_custom_call.1} parent=47 // pred_check
          %p314 = pneg %p80
        $region54: #{tpu_custom_call.1} parent=47 // pred_check_branch
          %316 = sbr.rel (%p314) target = $region56
        $region55: #{tpu_custom_call.1} parent=47 // pred_region
          %317 = dma.done [#allocation8], 256
        $region56: #{tpu_custom_call.1} parent=47 // pred_fallthru
          _
        // Predicated region
        $region57: #{tpu_custom_call.1} parent=47 // pred_check
          %p318 = pneg %p122
        $region58: #{tpu_custom_call.1} parent=47 // pred_check_branch
          %320 = sbr.rel (%p318) target = $region60
        $region59: #{tpu_custom_call.1} parent=47 // pred_region
          %321 = dma.done [#allocation8], 256
        $region60: #{tpu_custom_call.1} parent=47 // pred_fallthru
          _
        // Predicated region
        $region61: #{tpu_custom_call.1} parent=47 // pred_check
          %p322 = pneg %p164
        $region62: #{tpu_custom_call.1} parent=47 // pred_check_branch
          %324 = sbr.rel (%p322) target = $region64
        $region63: #{tpu_custom_call.1} parent=47 // pred_region
          %325 = dma.done [#allocation11], 256
        $region64: #{tpu_custom_call.1} parent=47 // pred_fallthru
          _
        %s326 = sand.u32 %s46, 1
        %s327 = scalar_lea.sflag [#allocation5], %s326
        %s328 = sand.u32 %s46, 1
        %s329 = smul.addr %s328, 4
        %s330 = scalar_lea.vmem [#allocation4], %s329
        %p331 = pneg %p59
        %p332 = pneg %p56
        %p333 = pneg %p80
        %p334 = pneg %p77
        %p335 = pneg %p101
        %p336 = pneg %p98
        %p337 = pneg %p122
        %p338 = pneg %p119
        %p339 = pneg %p143
        %p340 = pneg %p140
        %p341 = pneg %p164
        %p342 = pneg %p161
        %p343 = pneg %p185
        %p344 = pneg %p182
        %p345 = pneg %p213
        %p346 = pneg %p210
        %s347 = sand.u32 %s200, 1
        %s348 = scalar_lea.sflag [#allocation6], %s347
        %s349 = sand.u32 %s200, 1
        %s350 = smul.addr %s349, 8
        %s351 = scalar_lea.vmem [#allocation12], %s350
        %p353 = scmp.eq.s32.totalorder %s31, 0
        // Predicated region
        $region65: #{tpu_custom_call.1} parent=47 // pred_check
          %p354 = pneg %p353
        $region66: #{tpu_custom_call.1} parent=47 // pred_check_branch
          %356 = sbr.rel (%p354) target = $region68
        $region67: #{tpu_custom_call.1} parent=47 // pred_region
          %v357 = vld [vmem:[%s309] sm:$0xf]
          %v358 = vld [vmem:[#allocation9] sm:$0xf]
          %v359 = vld [vmem:[#allocation9 + $0x4] sm:$0xf]
          %v360 = vld [vmem:[#allocation9 + $0x8] sm:$0xf]
          %v361 = vld [vmem:[#allocation9 + $0xc] sm:$0xf]
          %v362 = vld [vmem:[%s4] sm:$0x1]
          %v364 = vlaneseq
          %v365 = vshrl.u32 %v364, 7
          %v366 = vsub.s32 0, %v365
          %v367 = vrot.slane %v362, %v366
          %v373 = vunpack.c.l.b16 %v358
          %v374 = vunpack.c.l.b16 %v359
          %v375 = vunpack.c.l.b16 %v360
          %v376 = vunpack.c.l.b16 %v361
          %v377 = vpack.c.b16 %v374, %v373
          %v378 = vpack.c.b16 %v376, %v375
          %vm381 = vcmask 261120
          %v383 = vsel %vm381, %v357, 0
          %385 = vmatprep.subr.bf16.mxu0 0
          %386 = vmatpush1.bf16.msra.mxu0 0
          %387 = vmatprep.subr.bf16.mxu0 0
          %388 = vmatpush1.bf16.msra.mxu0 0
          %389 = vmatprep.subr.bf16.mxu0 0
          %390 = vmatpush1.bf16.msra.mxu0 0
          %391 = vmatprep.subr.bf16.mxu0 0
          %392 = vmatpush1.bf16.msra.mxu0 0
          %393 = vmatprep.subr.bf16.mxu0 0
          %394 = vmatpush1.bf16.msra.mxu0 0
          %395 = vmatprep.subr.bf16.mxu0 0
          %396 = vmatpush1.bf16.msra.mxu0 0
          %397 = vmatprep.subr.bf16.mxu0 0
          %398 = vmatpush1.bf16.msra.mxu0 %v378
          %399 = vmatprep.subr.bf16.mxu0 0
          %400 = vmatpush1.bf16.msra.mxu0 %v377
          %401 = vmatprep.subr.bf16.mxu0 0
          %402 = vmatpush2.bf16.msra.mxu0 0
          %403 = vmatprep.subr.bf16.mxu0 0
          %404 = vmatpush2.bf16.msra.mxu0 0
          %405 = vmatprep.subr.bf16.mxu0 0
          %406 = vmatpush2.bf16.msra.mxu0 0
          %407 = vmatprep.subr.bf16.mxu0 0
          %408 = vmatpush2.bf16.msra.mxu0 0
          %409 = vmatprep.subr.bf16.mxu0 0
          %410 = vmatpush2.bf16.msra.mxu0 0
          %411 = vmatprep.subr.bf16.mxu0 0
          %412 = vmatpush2.bf16.msra.mxu0 0
          %413 = vmatprep.subr.bf16.mxu0 0
          %414 = vmatpush2.bf16.msra.mxu0 0
          %415 = vmatprep.subr.bf16.mxu0 0
          %416 = vmatpush2.bf16.msra.mxu0 0
          %417 = vmatprep.mubr.bf16.mxu0 0
          %418 = vmatmul.mubr.bf16.gmra.mxu0 %v383
          %v419 = vpop.f32.mrf.mxu0
          %v420 = vadd.f32 %v367, %v419
          %v421 = vpop.f32.mrf.mxu0
          %v422 = vpop.f32.mrf.mxu0
          %v423 = vpop.f32.mrf.mxu0
          %424 = vdwg.mxu0
          %v425 = vpack.c.bf16 %v420, %v420
          %427 = vrot.lane.b32.xlu0 %v425, 120
          %v428 = vpop.permute.xlu0 %427
          %430 = vrot.lane.b32.xlu0 %v425, 112
          %v431 = vpop.permute.xlu0 %430
          %433 = vrot.lane.b32.xlu0 %v425, 104
          %v434 = vpop.permute.xlu0 %433
          %vm436 = vcmask 60416
          %437 = vst.msk [vmem:[#allocation2] sm:$0xf] %vm436, %v425
          %438 = vst.msk [vmem:[#allocation2 + $0x4] sm:$0xf] %vm436, %v428
          %439 = vst.msk [vmem:[#allocation2 + $0x8] sm:$0xf] %vm436, %v431
          %440 = vst.msk [vmem:[#allocation2 + $0xc] sm:$0xf] %vm436, %v434
          %v441 = vunpack.c.l.b16 %v425
          %v442 = vunpack.c.l.b16 %v428
          %v443 = vunpack.c.l.b16 %v431
          %v444 = vunpack.c.l.b16 %v434
          %v445 = vpack.c.b16 %v441, %v441
          %v446 = vpack.c.b16 %v442, %v442
          %v447 = vpack.c.b16 %v443, %v443
          %v448 = vpack.c.b16 %v444, %v444
          %449 = vrot.lane.b32.xlu0 %v445, 96
          %v450 = vpop.permute.xlu0 %449
          %451 = vrot.lane.b32.xlu0 %v446, 96
          %v452 = vpop.permute.xlu0 %451
          %453 = vrot.lane.b32.xlu0 %v447, 96
          %v454 = vpop.permute.xlu0 %453
          %455 = vrot.lane.b32.xlu0 %v448, 96
          %v456 = vpop.permute.xlu0 %455
          %461 = vst.msk [vmem:[#allocation3] sm:$0xf] %vm436, %v450
          %462 = vst.msk [vmem:[#allocation3 + $0x4] sm:$0xf] %vm436, %v452
          %463 = vst.msk [vmem:[#allocation3 + $0x8] sm:$0xf] %vm436, %v454
          %464 = vst.msk [vmem:[#allocation3 + $0xc] sm:$0xf] %vm436, %v456
        $region68: #{tpu_custom_call.1} parent=47 // pred_fallthru
          _
        %s465 = smul.u32 %s31, 8
        %s466 = sshra.s32 %s465, 3
        %s467 = sand.u32 %s465, 7
        %s468 = smul.addr %s466, 4
        %s469 = scalar_lea.vmem %s309, %s468 [#allocation4]
        %v470 = vld [vmem:[%s469] sm:$0xf]
        %v471 = vld [vmem:[#allocation7] sm:$0xf]
        %v472 = vld [vmem:[#allocation7 + $0x4] sm:$0xf]
        %v473 = vld [vmem:[#allocation7 + $0x8] sm:$0xf]
        %v474 = vld [vmem:[#allocation7 + $0xc] sm:$0xf]
        %v475 = vld [vmem:[%s2] sm:$0x1]
        %v477 = vlaneseq
        %v478 = vshrl.u32 %v477, 7
        %v479 = vsub.s32 0, %v478
        %v480 = vrot.slane %v475, %v479
        %v486 = vunpack.c.l.b16 %v471
        %v487 = vunpack.c.l.b16 %v472
        %v488 = vunpack.c.l.b16 %v473
        %v489 = vunpack.c.l.b16 %v474
        %v490 = vpack.c.b16 %v487, %v486
        %v491 = vpack.c.b16 %v489, %v488
        %vm494 = vcmask 261120
        %v496 = vsel %vm494, %v470, 0
        %498 = vmatprep.subr.bf16.mxu0 0
        %499 = vmatpush1.bf16.msra.mxu0 0
        %500 = vmatprep.subr.bf16.mxu0 0
        %501 = vmatpush1.bf16.msra.mxu0 0
        %502 = vmatprep.subr.bf16.mxu0 0
        %503 = vmatpush1.bf16.msra.mxu0 0
        %504 = vmatprep.subr.bf16.mxu0 0
        %505 = vmatpush1.bf16.msra.mxu0 0
        %506 = vmatprep.subr.bf16.mxu0 0
        %507 = vmatpush1.bf16.msra.mxu0 0
        %508 = vmatprep.subr.bf16.mxu0 0
        %509 = vmatpush1.bf16.msra.mxu0 0
        %510 = vmatprep.subr.bf16.mxu0 0
        %511 = vmatpush1.bf16.msra.mxu0 %v491
        %512 = vmatprep.subr.bf16.mxu0 0
        %513 = vmatpush1.bf16.msra.mxu0 %v490
        %514 = vmatprep.subr.bf16.mxu0 0
        %515 = vmatpush2.bf16.msra.mxu0 0
        %516 = vmatprep.subr.bf16.mxu0 0
        %517 = vmatpush2.bf16.msra.mxu0 0
        %518 = vmatprep.subr.bf16.mxu0 0
        %519 = vmatpush2.bf16.msra.mxu0 0
        %520 = vmatprep.subr.bf16.mxu0 0
        %521 = vmatpush2.bf16.msra.mxu0 0
        %522 = vmatprep.subr.bf16.mxu0 0
        %523 = vmatpush2.bf16.msra.mxu0 0
        %524 = vmatprep.subr.bf16.mxu0 0
        %525 = vmatpush2.bf16.msra.mxu0 0
        %526 = vmatprep.subr.bf16.mxu0 0
        %527 = vmatpush2.bf16.msra.mxu0 0
        %528 = vmatprep.subr.bf16.mxu0 0
        %529 = vmatpush2.bf16.msra.mxu0 0
        %530 = vmatprep.mubr.bf16.mxu0 0
        %531 = vmatmul.mubr.bf16.gmra.mxu0 %v496
        %v532 = vpop.f32.mrf.mxu0
        %v533 = vadd.f32 %v480, %v532
        %v534 = vpop.f32.mrf.mxu0
        %v535 = vpop.f32.mrf.mxu0
        %v536 = vpop.f32.mrf.mxu0
        %537 = vdwg.mxu0
        %v538 = vpack.c.bf16 %v533, %v533
        %540 = vrot.lane.b32.xlu0 %v538, 120
        %v541 = vpop.permute.xlu0 %540
        %542 = vrot.lane.b32.xlu0 %v538, 112
        %v543 = vpop.permute.xlu0 %542
        %544 = vrot.lane.b32.xlu0 %v538, 104
        %v545 = vpop.permute.xlu0 %544
        %v546 = vld [vmem:[#allocation2] sm:$0xf]
        %v547 = vld [vmem:[#allocation2 + $0x4] sm:$0xf]
        %v548 = vld [vmem:[#allocation2 + $0x8] sm:$0xf]
        %v549 = vld [vmem:[#allocation2 + $0xc] sm:$0xf]
        %vm550 = vcmask 64512
        %v552 = vsel %vm550, %v538, 0
        %v555 = vsel %vm550, %v546, 0
        %557 = vmatprep.subr.bf16.mxu0 0
        %558 = vmatpush1.bf16.xpose.msra.mxu0 0
        %559 = vmatprep.subr.bf16.mxu0 0
        %560 = vmatpush1.bf16.xpose.msra.mxu0 0
        %561 = vmatprep.subr.bf16.mxu0 0
        %562 = vmatpush1.bf16.xpose.msra.mxu0 0
        %563 = vmatprep.subr.bf16.mxu0 0
        %564 = vmatpush1.bf16.xpose.msra.mxu0 0
        %565 = vmatprep.subr.bf16.mxu0 0
        %566 = vmatpush1.bf16.xpose.msra.mxu0 0
        %567 = vmatprep.subr.bf16.mxu0 0
        %568 = vmatpush1.bf16.xpose.msra.mxu0 0
        %569 = vmatprep.subr.bf16.mxu0 0
        %570 = vmatpush1.bf16.xpose.msra.mxu0 0
        %571 = vmatprep.subr.bf16.mxu0 0
        %572 = vmatpush1.bf16.xpose.msra.mxu0 %v555
        %573 = vmatprep.subr.bf16.mxu0 0
        %574 = vmatpush2.bf16.xpose.msra.mxu0 0
        %575 = vmatprep.subr.bf16.mxu0 0
        %576 = vmatpush2.bf16.xpose.msra.mxu0 0
        %577 = vmatprep.subr.bf16.mxu0 0
        %578 = vmatpush2.bf16.xpose.msra.mxu0 0
        %579 = vmatprep.subr.bf16.mxu0 0
        %580 = vmatpush2.bf16.xpose.msra.mxu0 0
        %581 = vmatprep.subr.bf16.mxu0 0
        %582 = vmatpush2.bf16.xpose.msra.mxu0 0
        %583 = vmatprep.subr.bf16.mxu0 0
        %584 = vmatpush2.bf16.xpose.msra.mxu0 0
        %585 = vmatprep.subr.bf16.mxu0 0
        %586 = vmatpush2.bf16.xpose.msra.mxu0 0
        %587 = vmatprep.subr.bf16.mxu0 0
        %588 = vmatpush2.bf16.xpose.msra.mxu0 0
        %589 = vmatprep.mubr.bf16.mxu0 0
        %590 = vmatmul.mubr.bf16.gmra.mxu0 %v552
        %v591 = vpop.f32.mrf.mxu0
        %v592 = vadd.f32 0.0, %v591
        %v593 = vpop.f32.mrf.mxu0
        %v594 = vpop.f32.mrf.mxu0
        %v595 = vpop.f32.mrf.mxu0
        %596 = vdwg.mxu0
        %v598 = vsel %vm550, %v541, 0
        %v601 = vsel %vm550, %v547, 0
        %603 = vmatprep.subr.bf16.mxu0 0
        %604 = vmatpush1.bf16.xpose.msra.mxu0 0
        %605 = vmatprep.subr.bf16.mxu0 0
        %606 = vmatpush1.bf16.xpose.msra.mxu0 0
        %607 = vmatprep.subr.bf16.mxu0 0
        %608 = vmatpush1.bf16.xpose.msra.mxu0 0
        %609 = vmatprep.subr.bf16.mxu0 0
        %610 = vmatpush1.bf16.xpose.msra.mxu0 0
        %611 = vmatprep.subr.bf16.mxu0 0
        %612 = vmatpush1.bf16.xpose.msra.mxu0 0
        %613 = vmatprep.subr.bf16.mxu0 0
        %614 = vmatpush1.bf16.xpose.msra.mxu0 0
        %615 = vmatprep.subr.bf16.mxu0 0
        %616 = vmatpush1.bf16.xpose.msra.mxu0 0
        %617 = vmatprep.subr.bf16.mxu0 0
        %618 = vmatpush1.bf16.xpose.msra.mxu0 %v601
        %619 = vmatprep.subr.bf16.mxu0 0
        %620 = vmatpush2.bf16.xpose.msra.mxu0 0
        %621 = vmatprep.subr.bf16.mxu0 0
        %622 = vmatpush2.bf16.xpose.msra.mxu0 0
        %623 = vmatprep.subr.bf16.mxu0 0
        %624 = vmatpush2.bf16.xpose.msra.mxu0 0
        %625 = vmatprep.subr.bf16.mxu0 0
        %626 = vmatpush2.bf16.xpose.msra.mxu0 0
        %627 = vmatprep.subr.bf16.mxu0 0
        %628 = vmatpush2.bf16.xpose.msra.mxu0 0
        %629 = vmatprep.subr.bf16.mxu0 0
        %630 = vmatpush2.bf16.xpose.msra.mxu0 0
        %631 = vmatprep.subr.bf16.mxu0 0
        %632 = vmatpush2.bf16.xpose.msra.mxu0 0
        %633 = vmatprep.subr.bf16.mxu0 0
        %634 = vmatpush2.bf16.xpose.msra.mxu0 0
        %635 = vmatprep.mubr.bf16.mxu0 0
        %636 = vmatmul.mubr.bf16.gmra.mxu0 %v598
        %v637 = vpop.f32.mrf.mxu0
        %v638 = vadd.f32 0.0, %v637
        %v639 = vpop.f32.mrf.mxu0
        %v640 = vpop.f32.mrf.mxu0
        %v641 = vpop.f32.mrf.mxu0
        %642 = vdwg.mxu0
        %v644 = vsel %vm550, %v543, 0
        %v647 = vsel %vm550, %v548, 0
        %649 = vmatprep.subr.bf16.mxu0 0
        %650 = vmatpush1.bf16.xpose.msra.mxu0 0
        %651 = vmatprep.subr.bf16.mxu0 0
        %652 = vmatpush1.bf16.xpose.msra.mxu0 0
        %653 = vmatprep.subr.bf16.mxu0 0
        %654 = vmatpush1.bf16.xpose.msra.mxu0 0
        %655 = vmatprep.subr.bf16.mxu0 0
        %656 = vmatpush1.bf16.xpose.msra.mxu0 0
        %657 = vmatprep.subr.bf16.mxu0 0
        %658 = vmatpush1.bf16.xpose.msra.mxu0 0
        %659 = vmatprep.subr.bf16.mxu0 0
        %660 = vmatpush1.bf16.xpose.msra.mxu0 0
        %661 = vmatprep.subr.bf16.mxu0 0
        %662 = vmatpush1.bf16.xpose.msra.mxu0 0
        %663 = vmatprep.subr.bf16.mxu0 0
        %664 = vmatpush1.bf16.xpose.msra.mxu0 %v647
        %665 = vmatprep.subr.bf16.mxu0 0
        %666 = vmatpush2.bf16.xpose.msra.mxu0 0
        %667 = vmatprep.subr.bf16.mxu0 0
        %668 = vmatpush2.bf16.xpose.msra.mxu0 0
        %669 = vmatprep.subr.bf16.mxu0 0
        %670 = vmatpush2.bf16.xpose.msra.mxu0 0
        %671 = vmatprep.subr.bf16.mxu0 0
        %672 = vmatpush2.bf16.xpose.msra.mxu0 0
        %673 = vmatprep.subr.bf16.mxu0 0
        %674 = vmatpush2.bf16.xpose.msra.mxu0 0
        %675 = vmatprep.subr.bf16.mxu0 0
        %676 = vmatpush2.bf16.xpose.msra.mxu0 0
        %677 = vmatprep.subr.bf16.mxu0 0
        %678 = vmatpush2.bf16.xpose.msra.mxu0 0
        %679 = vmatprep.subr.bf16.mxu0 0
        %680 = vmatpush2.bf16.xpose.msra.mxu0 0
        %681 = vmatprep.mubr.bf16.mxu0 0
        %682 = vmatmul.mubr.bf16.gmra.mxu0 %v644
        %v683 = vpop.f32.mrf.mxu0
        %v684 = vadd.f32 0.0, %v683
        %v685 = vpop.f32.mrf.mxu0
        %v686 = vpop.f32.mrf.mxu0
        %v687 = vpop.f32.mrf.mxu0
        %688 = vdwg.mxu0
        %v690 = vsel %vm550, %v545, 0
        %v693 = vsel %vm550, %v549, 0
        %695 = vmatprep.subr.bf16.mxu0 0
        %696 = vmatpush1.bf16.xpose.msra.mxu0 0
        %697 = vmatprep.subr.bf16.mxu0 0
        %698 = vmatpush1.bf16.xpose.msra.mxu0 0
        %699 = vmatprep.subr.bf16.mxu0 0
        %700 = vmatpush1.bf16.xpose.msra.mxu0 0
        %701 = vmatprep.subr.bf16.mxu0 0
        %702 = vmatpush1.bf16.xpose.msra.mxu0 0
        %703 = vmatprep.subr.bf16.mxu0 0
        %704 = vmatpush1.bf16.xpose.msra.mxu0 0
        %705 = vmatprep.subr.bf16.mxu0 0
        %706 = vmatpush1.bf16.xpose.msra.mxu0 0
        %707 = vmatprep.subr.bf16.mxu0 0
        %708 = vmatpush1.bf16.xpose.msra.mxu0 0
        %709 = vmatprep.subr.bf16.mxu0 0
        %710 = vmatpush1.bf16.xpose.msra.mxu0 %v693
        %711 = vmatprep.subr.bf16.mxu0 0
        %712 = vmatpush2.bf16.xpose.msra.mxu0 0
        %713 = vmatprep.subr.bf16.mxu0 0
        %714 = vmatpush2.bf16.xpose.msra.mxu0 0
        %715 = vmatprep.subr.bf16.mxu0 0
        %716 = vmatpush2.bf16.xpose.msra.mxu0 0
        %717 = vmatprep.subr.bf16.mxu0 0
        %718 = vmatpush2.bf16.xpose.msra.mxu0 0
        %719 = vmatprep.subr.bf16.mxu0 0
        %720 = vmatpush2.bf16.xpose.msra.mxu0 0
        %721 = vmatprep.subr.bf16.mxu0 0
        %722 = vmatpush2.bf16.xpose.msra.mxu0 0
        %723 = vmatprep.subr.bf16.mxu0 0
        %724 = vmatpush2.bf16.xpose.msra.mxu0 0
        %725 = vmatprep.subr.bf16.mxu0 0
        %726 = vmatpush2.bf16.xpose.msra.mxu0 0
        %727 = vmatprep.mubr.bf16.mxu0 0
        %728 = vmatmul.mubr.bf16.gmra.mxu0 %v690
        %v729 = vpop.f32.mrf.mxu0
        %v730 = vadd.f32 0.0, %v729
        %v731 = vpop.f32.mrf.mxu0
        %v732 = vpop.f32.mrf.mxu0
        %v733 = vpop.f32.mrf.mxu0
        %734 = vdwg.mxu0
        %v735 = vsel %vm550, %v592, -inf
        %736 = vmax.xlane.f32.xlu0 %v735
        %v737 = vpop.xlane.xlu0 %736
        %v738 = vsel %vm550, %v638, -inf
        %739 = vmax.xlane.f32.xlu0 %v738
        %v740 = vpop.xlane.xlu0 %739
        %v741 = vsel %vm550, %v684, -inf
        %742 = vmax.xlane.f32.xlu0 %v741
        %v743 = vpop.xlane.xlu0 %742
        %v744 = vsel %vm550, %v730, -inf
        %745 = vmax.xlane.f32.xlu0 %v744
        %v746 = vpop.xlane.xlu0 %745
        %v747 = vsub.f32 %v592, %v737
        %v748 = vsub.f32 %v638, %v740
        %v749 = vsub.f32 %v684, %v743
        %v750 = vsub.f32 %v730, %v746
        %v751 = vmul.f32 %v747, 1.442695
        %v752 = vpow.pop %v751
        %v753 = vmul.f32 %v748, 1.442695
        %v754 = vpow.pop %v753
        %v755 = vmul.f32 %v749, 1.442695
        %v756 = vpow.pop %v755
        %v757 = vmul.f32 %v750, 1.442695
        %v758 = vpow.pop %v757
        %v759 = vsel %vm550, %v752, 0.0
        %760 = vadd.xlane.f32.xlu0 %v759
        %v761 = vpop.xlane.xlu0 %760
        %v762 = vsel %vm550, %v754, 0.0
        %763 = vadd.xlane.f32.xlu0 %v762
        %v764 = vpop.xlane.xlu0 %763
        %v765 = vsel %vm550, %v756, 0.0
        %766 = vadd.xlane.f32.xlu0 %v765
        %v767 = vpop.xlane.xlu0 %766
        %v768 = vsel %vm550, %v758, 0.0
        %769 = vadd.xlane.f32.xlu0 %v768
        %v770 = vpop.xlane.xlu0 %769
        %v771 = vpack.c.bf16 %v752, %v752
        %v772 = vpack.c.bf16 %v754, %v754
        %v773 = vpack.c.bf16 %v756, %v756
        %v774 = vpack.c.bf16 %v758, %v758
        %v775 = vld [vmem:[#allocation3] sm:$0xf]
        %v776 = vld [vmem:[#allocation3 + $0x4] sm:$0xf]
        %v777 = vld [vmem:[#allocation3 + $0x8] sm:$0xf]
        %v778 = vld [vmem:[#allocation3 + $0xc] sm:$0xf]
        %v780 = vsel %vm550, %v771, 0
        %vm782 = vcmask 1043456
        %v784 = vsel %vm782, %v775, 0
        %786 = vmatprep.subr.bf16.mxu0 0
        %787 = vmatpush1.bf16.msra.mxu0 0
        %788 = vmatprep.subr.bf16.mxu0 0
        %789 = vmatpush1.bf16.msra.mxu0 0
        %790 = vmatprep.subr.bf16.mxu0 0
        %791 = vmatpush1.bf16.msra.mxu0 0
        %792 = vmatprep.subr.bf16.mxu0 0
        %793 = vmatpush1.bf16.msra.mxu0 0
        %794 = vmatprep.subr.bf16.mxu0 0
        %795 = vmatpush1.bf16.msra.mxu0 0
        %796 = vmatprep.subr.bf16.mxu0 0
        %797 = vmatpush1.bf16.msra.mxu0 0
        %798 = vmatprep.subr.bf16.mxu0 0
        %799 = vmatpush1.bf16.msra.mxu0 0
        %800 = vmatprep.subr.bf16.mxu0 0
        %801 = vmatpush1.bf16.msra.mxu0 %v784
        %802 = vmatprep.subr.bf16.mxu0 0
        %803 = vmatpush2.bf16.msra.mxu0 0
        %804 = vmatprep.subr.bf16.mxu0 0
        %805 = vmatpush2.bf16.msra.mxu0 0
        %806 = vmatprep.subr.bf16.mxu0 0
        %807 = vmatpush2.bf16.msra.mxu0 0
        %808 = vmatprep.subr.bf16.mxu0 0
        %809 = vmatpush2.bf16.msra.mxu0 0
        %810 = vmatprep.subr.bf16.mxu0 0
        %811 = vmatpush2.bf16.msra.mxu0 0
        %812 = vmatprep.subr.bf16.mxu0 0
        %813 = vmatpush2.bf16.msra.mxu0 0
        %814 = vmatprep.subr.bf16.mxu0 0
        %815 = vmatpush2.bf16.msra.mxu0 0
        %816 = vmatprep.subr.bf16.mxu0 0
        %817 = vmatpush2.bf16.msra.mxu0 0
        %818 = vmatprep.mubr.bf16.mxu0 0
        %819 = vmatmul.mubr.bf16.gmra.mxu0 %v780
        %v820 = vpop.f32.mrf.mxu0
        %v821 = vadd.f32 0.0, %v820
        %v822 = vpop.f32.mrf.mxu0
        %v823 = vpop.f32.mrf.mxu0
        %v824 = vpop.f32.mrf.mxu0
        %825 = vdwg.mxu0
        %v827 = vsel %vm550, %v772, 0
        %v830 = vsel %vm782, %v776, 0
        %832 = vmatprep.subr.bf16.mxu0 0
        %833 = vmatpush1.bf16.msra.mxu0 0
        %834 = vmatprep.subr.bf16.mxu0 0
        %835 = vmatpush1.bf16.msra.mxu0 0
        %836 = vmatprep.subr.bf16.mxu0 0
        %837 = vmatpush1.bf16.msra.mxu0 0
        %838 = vmatprep.subr.bf16.mxu0 0
        %839 = vmatpush1.bf16.msra.mxu0 0
        %840 = vmatprep.subr.bf16.mxu0 0
        %841 = vmatpush1.bf16.msra.mxu0 0
        %842 = vmatprep.subr.bf16.mxu0 0
        %843 = vmatpush1.bf16.msra.mxu0 0
        %844 = vmatprep.subr.bf16.mxu0 0
        %845 = vmatpush1.bf16.msra.mxu0 0
        %846 = vmatprep.subr.bf16.mxu0 0
        %847 = vmatpush1.bf16.msra.mxu0 %v830
        %848 = vmatprep.subr.bf16.mxu0 0
        %849 = vmatpush2.bf16.msra.mxu0 0
        %850 = vmatprep.subr.bf16.mxu0 0
        %851 = vmatpush2.bf16.msra.mxu0 0
        %852 = vmatprep.subr.bf16.mxu0 0
        %853 = vmatpush2.bf16.msra.mxu0 0
        %854 = vmatprep.subr.bf16.mxu0 0
        %855 = vmatpush2.bf16.msra.mxu0 0
        %856 = vmatprep.subr.bf16.mxu0 0
        %857 = vmatpush2.bf16.msra.mxu0 0
        %858 = vmatprep.subr.bf16.mxu0 0
        %859 = vmatpush2.bf16.msra.mxu0 0
        %860 = vmatprep.subr.bf16.mxu0 0
        %861 = vmatpush2.bf16.msra.mxu0 0
        %862 = vmatprep.subr.bf16.mxu0 0
        %863 = vmatpush2.bf16.msra.mxu0 0
        %864 = vmatprep.mubr.bf16.mxu0 0
        %865 = vmatmul.mubr.bf16.gmra.mxu0 %v827
        %v866 = vpop.f32.mrf.mxu0
        %v867 = vadd.f32 0.0, %v866
        %v868 = vpop.f32.mrf.mxu0
        %v869 = vpop.f32.mrf.mxu0
        %v870 = vpop.f32.mrf.mxu0
        %871 = vdwg.mxu0
        %v873 = vsel %vm550, %v773, 0
        %v876 = vsel %vm782, %v777, 0
        %878 = vmatprep.subr.bf16.mxu0 0
        %879 = vmatpush1.bf16.msra.mxu0 0
        %880 = vmatprep.subr.bf16.mxu0 0
        %881 = vmatpush1.bf16.msra.mxu0 0
        %882 = vmatprep.subr.bf16.mxu0 0
        %883 = vmatpush1.bf16.msra.mxu0 0
        %884 = vmatprep.subr.bf16.mxu0 0
        %885 = vmatpush1.bf16.msra.mxu0 0
        %886 = vmatprep.subr.bf16.mxu0 0
        %887 = vmatpush1.bf16.msra.mxu0 0
        %888 = vmatprep.subr.bf16.mxu0 0
        %889 = vmatpush1.bf16.msra.mxu0 0
        %890 = vmatprep.subr.bf16.mxu0 0
        %891 = vmatpush1.bf16.msra.mxu0 0
        %892 = vmatprep.subr.bf16.mxu0 0
        %893 = vmatpush1.bf16.msra.mxu0 %v876
        %894 = vmatprep.subr.bf16.mxu0 0
        %895 = vmatpush2.bf16.msra.mxu0 0
        %896 = vmatprep.subr.bf16.mxu0 0
        %897 = vmatpush2.bf16.msra.mxu0 0
        %898 = vmatprep.subr.bf16.mxu0 0
        %899 = vmatpush2.bf16.msra.mxu0 0
        %900 = vmatprep.subr.bf16.mxu0 0
        %901 = vmatpush2.bf16.msra.mxu0 0
        %902 = vmatprep.subr.bf16.mxu0 0
        %903 = vmatpush2.bf16.msra.mxu0 0
        %904 = vmatprep.subr.bf16.mxu0 0
        %905 = vmatpush2.bf16.msra.mxu0 0
        %906 = vmatprep.subr.bf16.mxu0 0
        %907 = vmatpush2.bf16.msra.mxu0 0
        %908 = vmatprep.subr.bf16.mxu0 0
        %909 = vmatpush2.bf16.msra.mxu0 0
        %910 = vmatprep.mubr.bf16.mxu0 0
        %911 = vmatmul.mubr.bf16.gmra.mxu0 %v873
        %v912 = vpop.f32.mrf.mxu0
        %v913 = vadd.f32 0.0, %v912
        %v914 = vpop.f32.mrf.mxu0
        %v915 = vpop.f32.mrf.mxu0
        %v916 = vpop.f32.mrf.mxu0
        %917 = vdwg.mxu0
        %v919 = vsel %vm550, %v774, 0
        %v922 = vsel %vm782, %v778, 0
        %924 = vmatprep.subr.bf16.mxu0 0
        %925 = vmatpush1.bf16.msra.mxu0 0
        %926 = vmatprep.subr.bf16.mxu0 0
        %927 = vmatpush1.bf16.msra.mxu0 0
        %928 = vmatprep.subr.bf16.mxu0 0
        %929 = vmatpush1.bf16.msra.mxu0 0
        %930 = vmatprep.subr.bf16.mxu0 0
        %931 = vmatpush1.bf16.msra.mxu0 0
        %932 = vmatprep.subr.bf16.mxu0 0
        %933 = vmatpush1.bf16.msra.mxu0 0
        %934 = vmatprep.subr.bf16.mxu0 0
        %935 = vmatpush1.bf16.msra.mxu0 0
        %936 = vmatprep.subr.bf16.mxu0 0
        %937 = vmatpush1.bf16.msra.mxu0 0
        %938 = vmatprep.subr.bf16.mxu0 0
        %939 = vmatpush1.bf16.msra.mxu0 %v922
        %940 = vmatprep.subr.bf16.mxu0 0
        %941 = vmatpush2.bf16.msra.mxu0 0
        %942 = vmatprep.subr.bf16.mxu0 0
        %943 = vmatpush2.bf16.msra.mxu0 0
        %944 = vmatprep.subr.bf16.mxu0 0
        %945 = vmatpush2.bf16.msra.mxu0 0
        %946 = vmatprep.subr.bf16.mxu0 0
        %947 = vmatpush2.bf16.msra.mxu0 0
        %948 = vmatprep.subr.bf16.mxu0 0
        %949 = vmatpush2.bf16.msra.mxu0 0
        %950 = vmatprep.subr.bf16.mxu0 0
        %951 = vmatpush2.bf16.msra.mxu0 0
        %952 = vmatprep.subr.bf16.mxu0 0
        %953 = vmatpush2.bf16.msra.mxu0 0
        %954 = vmatprep.subr.bf16.mxu0 0
        %955 = vmatpush2.bf16.msra.mxu0 0
        %956 = vmatprep.mubr.bf16.mxu0 0
        %957 = vmatmul.mubr.bf16.gmra.mxu0 %v919
        %v958 = vpop.f32.mrf.mxu0
        %v959 = vadd.f32 0.0, %v958
        %v960 = vpop.f32.mrf.mxu0
        %v961 = vpop.f32.mrf.mxu0
        %v962 = vpop.f32.mrf.mxu0
        %963 = vdwg.mxu0
        %v964 = vrcp.pop %v761
        %v965 = vrcp.pop %v764
        %v966 = vrcp.pop %v767
        %v967 = vrcp.pop %v770
        %v968 = vmul.f32 %v821, %v964
        %v969 = vmul.f32 %v867, %v965
        %v970 = vmul.f32 %v913, %v966
        %v971 = vmul.f32 %v959, %v967
        %973 = vrot.lane.b32.xlu0 %v969, 8
        %v974 = vpop.permute.xlu0 %973
        %977 = vrot.lane.b32.xlu0 %v970, 16
        %v978 = vpop.permute.xlu0 %977
        %981 = vrot.lane.b32.xlu0 %v971, 24
        %v982 = vpop.permute.xlu0 %981
        %v984 = vsel %vm550, %v968, %v974
        %vm985 = vcmask 130048
        %v986 = vsel %vm985, %v984, %v978
        %vm987 = vcmask 195584
        %v988 = vsel %vm987, %v986, %v982
        %v989 = vpack.c.bf16 %v988, %v988
        %v990 = vld [vmem:[#allocation10] sm:$0xf]
        %v991 = vld [vmem:[#allocation10 + $0x4] sm:$0xf]
        %v992 = vld [vmem:[#allocation10 + $0x8] sm:$0xf]
        %v993 = vld [vmem:[#allocation10 + $0xc] sm:$0xf]
        %v994 = vld [vmem:[%s6] sm:$0x1]
        %v996 = vlaneseq
        %v997 = vshrl.u32 %v996, 7
        %v998 = vsub.s32 0, %v997
        %v999 = vrot.slane %v994, %v998
        %v1005 = vunpack.c.l.b16 %v990
        %v1006 = vunpack.c.l.b16 %v991
        %v1007 = vunpack.c.l.b16 %v992
        %v1008 = vunpack.c.l.b16 %v993
        %v1009 = vpack.c.b16 %v1006, %v1005
        %v1010 = vpack.c.b16 %v1008, %v1007
        %v1014 = vsel %vm494, %v989, 0
        %1016 = vmatprep.subr.bf16.mxu0 0
        %1017 = vmatpush1.bf16.msra.mxu0 0
        %1018 = vmatprep.subr.bf16.mxu0 0
        %1019 = vmatpush1.bf16.msra.mxu0 0
        %1020 = vmatprep.subr.bf16.mxu0 0
        %1021 = vmatpush1.bf16.msra.mxu0 0
        %1022 = vmatprep.subr.bf16.mxu0 0
        %1023 = vmatpush1.bf16.msra.mxu0 0
        %1024 = vmatprep.subr.bf16.mxu0 0
        %1025 = vmatpush1.bf16.msra.mxu0 0
        %1026 = vmatprep.subr.bf16.mxu0 0
        %1027 = vmatpush1.bf16.msra.mxu0 0
        %1028 = vmatprep.subr.bf16.mxu0 0
        %1029 = vmatpush1.bf16.msra.mxu0 %v1010
        %1030 = vmatprep.subr.bf16.mxu0 0
        %1031 = vmatpush1.bf16.msra.mxu0 %v1009
        %1032 = vmatprep.subr.bf16.mxu0 0
        %1033 = vmatpush2.bf16.msra.mxu0 0
        %1034 = vmatprep.subr.bf16.mxu0 0
        %1035 = vmatpush2.bf16.msra.mxu0 0
        %1036 = vmatprep.subr.bf16.mxu0 0
        %1037 = vmatpush2.bf16.msra.mxu0 0
        %1038 = vmatprep.subr.bf16.mxu0 0
        %1039 = vmatpush2.bf16.msra.mxu0 0
        %1040 = vmatprep.subr.bf16.mxu0 0
        %1041 = vmatpush2.bf16.msra.mxu0 0
        %1042 = vmatprep.subr.bf16.mxu0 0
        %1043 = vmatpush2.bf16.msra.mxu0 0
        %1044 = vmatprep.subr.bf16.mxu0 0
        %1045 = vmatpush2.bf16.msra.mxu0 0
        %1046 = vmatprep.subr.bf16.mxu0 0
        %1047 = vmatpush2.bf16.msra.mxu0 0
        %1048 = vmatprep.mubr.bf16.mxu0 0
        %1049 = vmatmul.mubr.bf16.gmra.mxu0 %v1014
        %v1050 = vpop.f32.mrf.mxu0
        %v1051 = vadd.f32 %v999, %v1050
        %v1052 = vpop.f32.mrf.mxu0
        %v1053 = vpop.f32.mrf.mxu0
        %v1054 = vpop.f32.mrf.mxu0
        %1055 = vdwg.mxu0
        %1056 = vst.msk [vmem:[%s351] sm:$0xff] %vm494, %v1051
        %s1057 = sand.u32 %s200, 1
        %s1058 = scalar_lea.sflag [#allocation6], %s1057
        %s1059 = sand.u32 %s200, 1
        %s1060 = smul.addr %s1059, 8
        %s1061 = scalar_lea.vmem [#allocation12], %s1060
        // Predicated region
        $region69: #{tpu_custom_call.1} parent=47 // pred_check
          %p1062 = pneg %p210
        $region70: #{tpu_custom_call.1} parent=47 // pred_check_branch
          %1064 = sbr.rel (%p1062) target = $region72
        $region71: #{tpu_custom_call.1} parent=47 // pred_region
          %s1066 = ssub.s32 128, 128
          %1067 = vsyncadd %s1058, %s1066
          %s1068 = sadd.s32 %s31, %s30
          %s1069 = smul.addr %s1068, 128
          %s1070 = scalar_lea.hbm %s7, %s1069
          %s1072 = sshll.u32 %s1061, 4
          %s1073 = int_to_ptr.vmem [resolvable:$true] %s1072
          %1075 = dma.vmem_to_hbm [thread:$0]  %s1073, 128, %s1070, %s1058
        $region72: #{tpu_custom_call.1} parent=47 // pred_fallthru
          _
      $region48: #{tpu_custom_call.1} parent=5 // pred_fallthru
        _
      %p1076 = scmp.le.s32.totalorder 2, %s21
      // Predicated region
      $region73: #{tpu_custom_call.1} parent=5 // pred_check
        %p1077 = pneg %p1076
      $region74: #{tpu_custom_call.1} parent=5 // pred_check_branch
        %1079 = sbr.rel (%p1077) target = $region76
      $region75: #{tpu_custom_call.1} parent=5 // pred_region
        %s1080 = ssub.s32 %s21, 2
        // Predicated region
        $region77: #{tpu_custom_call.1} parent=75 // pred_check
          %p1081 = pneg %p216
        $region78: #{tpu_custom_call.1} parent=75 // pred_check_branch
          %1083 = sbr.rel (%p1081) target = $region80
        $region79: #{tpu_custom_call.1} parent=75 // pred_region
          %s1084 = sand.u32 %s201, 1
          %s1085 = scalar_lea.sflag [#allocation6], %s1084
          %s1086 = sand.u32 %s201, 1
          %s1087 = smul.addr %s1086, 8
          %s1088 = scalar_lea.vmem [#allocation12], %s1087
          %1089 = dma.done %s1085, 128
        $region80: #{tpu_custom_call.1} parent=75 // pred_fallthru
          _
      $region76: #{tpu_custom_call.1} parent=5 // pred_fallthru
        _
    $region6: #{tpu_custom_call.1} parent=1 // loop_footer
      %s25 = sadd.s32 1, %s21
    $region7: #{tpu_custom_call.1} parent=1 // loop_footer_branch
      %20 = sbr.rel target = $region3
    $region8: #{tpu_custom_call.1} parent=1 // loop_exit
      _
    %1090 = vsyncpa [#allocation5], 1
    %s1091 = scalar_lea.sflag [#allocation5], 1
    %1092 = vsyncpa %s1091, 1
    %1093 = vsyncpa [#allocation8], 1
    %1094 = vsyncpa [#allocation11], 1
    %1095 = vsyncpa [#allocation6], 1
    %s1096 = scalar_lea.sflag [#allocation6], 1
    %1097 = vsyncpa %s1096, 1

</llo_original>
